<compile_context>
chip_gen: v7x
topology: tpu7x:2x2x1
jax: 0.10.0
libtpu: 0.0.40
codegen_flags: <defaults>
</compile_context>

<pallas_src>
import functools

import jax
import jax.numpy as jnp
from jax.experimental import pallas as pl
from jax.experimental.pallas import tpu as pltpu

BN_EPS = 1e-5
_LANE = 128      # lane alignment for weight-slab column offsets
_SUBLANE = 16    # row padding of the weight slab (bf16 sublane packing friendly)


def _round_up(x, m):
    return (x + m - 1) // m * m


# ------------------------------ fused kernel ------------------------------- #

def _vae_fwd_kernel(x_ref, eps_ref, w_ref, b_ref, out_ref, *,
                    layout, latent_dim, compute_dtype):
    """Entire VAE forward for one batch tile.

    All (BN-folded) weights sit in ONE VMEM-resident slab `w_ref` and all
    biases in ONE row `b_ref`; each layer takes a static slice.  MXU operands
    are `compute_dtype` (bf16 by default), accumulation and every element-wise
    op stay f32.  Output is a single lane-dense slab [x_hat | mu | log_var].
    """
    f32 = jnp.float32

    def dense(h, name):
        din, off, dout = layout[name]                    # static Python ints
        w = w_ref[0:din, off:off + dout]                 # resident slab slice
        b = b_ref[0:1, off:off + dout]
        return jnp.dot(h, w, preferred_element_type=f32) + b

    # ---- encoder (BN folded into W/b; dropout = identity in eval mode) ----
    h = x_ref[...].astype(compute_dtype)
    h = jnp.maximum(dense(h, "enc1"), 0.0).astype(compute_dtype)
    h = jnp.maximum(dense(h, "enc2"), 0.0).astype(compute_dtype)

    # ---- fused mu / log_var heads: one MXU push; slice only to compute z ----
    heads = dense(h, "heads")                            # (tb, 2L) f32 = [mu|lv]
    mu = heads[:, :latent_dim]
    log_var = heads[:, latent_dim:]

    # ---- reparameterization sample (f32 element-wise, v5e-safe) ----
    z = (mu + eps_ref[...] * jnp.exp(0.5 * log_var)).astype(compute_dtype)

    # ---- decoder ----
    d = jnp.maximum(dense(z, "dec1"), 0.0).astype(compute_dtype)
    d = jnp.maximum(dense(d, "dec2"), 0.0).astype(compute_dtype)
    x_hat = dense(d, "out")                              # (tb, input_dim) f32

    # ---- single lane-dense output store: [x_hat | mu | log_var] ----
    out_ref[...] = jnp.concatenate([x_hat, heads], axis=1).astype(out_ref.dtype)


# ------------------------------ host wrapper ------------------------------- #

def _fold_bn(w, b, scale, shift):
    """Fold eval-mode BN affine into the preceding Linear: y = x@W' + b'."""
    return w * scale[None, :], b * scale + shift


def _pick_batch_tile(batch, target=512):
    """Largest batch tile that divides B, is a sublane multiple, <= `target`,
    and leaves >= 2 grid steps when the batch is large (v7x megacore)."""
    if batch <= 8 or batch % 8 != 0:
        return batch
    cap = min(target, batch)
    if batch >= 64:                      # big enough: insist on >= 2 grid steps
        cap = min(cap, batch // 2)
    cap -= cap % 8
    for t in range(cap, 7, -8):
        if batch % t == 0:
            return t
    return batch


def vae_forward(p, x, eps, *, batch_tile=None, compute_dtype=jnp.bfloat16):
    """Fused single-kernel VAE forward.  Returns (x_hat, mu, log_var)."""
    B, input_dim = x.shape
    latent_dim = eps.shape[1]

    # -- host-side weight prep (tiny tensors, traced once under jit) --
    w1, b1 = _fold_bn(p["enc1_w"], p["enc1_b"], p["enc1_scale"], p["enc1_shift"])
    w2, b2 = _fold_bn(p["enc2_w"], p["enc2_b"], p["enc2_scale"], p["enc2_shift"])
    wh = jnp.concatenate([p["mu_w"], p["lv_w"]], axis=1)           # (Dh, 2L)
    bh = jnp.concatenate([p["mu_b"], p["lv_b"]], axis=0)           # (2L,)
    wd1, bd1 = _fold_bn(p["dec1_w"], p["dec1_b"], p["dec1_scale"], p["dec1_shift"])
    wd2, bd2 = _fold_bn(p["dec2_w"], p["dec2_b"], p["dec2_scale"], p["dec2_shift"])
    wo, bo = p["out_w"], p["out_b"]

    names = ["enc1", "enc2", "heads", "dec1", "dec2", "out"]
    ws = [w1, w2, wh, wd1, wd2, wo]
    bs = [b1, b2, bh, bd1, bd2, bo]

    # -- pack all weights into ONE (R, C) slab and all biases into ONE row --
    #    column offsets are 128-lane aligned so in-kernel static slices stay
    #    lane-aligned; weights cast to compute_dtype (bf16) halve weight DMA.
    R = _round_up(max(w.shape[0] for w in ws), _SUBLANE)
    layout = {}
    col = 0
    for name, w in zip(names, ws):
        din, dout = w.shape
        layout[name] = (din, col, dout)
        col += _round_up(dout, _LANE)
    C = col
    w_slab = jnp.zeros((R, C), compute_dtype)
    b_slab = jnp.zeros((1, C), jnp.float32)
    for name, w, b in zip(names, ws, bs):
        din, off, dout = layout[name]
        w_slab = w_slab.at[:din, off:off + dout].set(w.astype(compute_dtype))
        b_slab = b_slab.at[:, off:off + dout].set(
            b.reshape(1, -1).astype(jnp.float32))

    # -- batch tiling: big lane/sublane-dense tiles; >=2 steps for megacore --
    tb = batch_tile if batch_tile is not None else _pick_batch_tile(B)
    tb = min(tb, B)
    assert B % tb == 0, "batch must be divisible by the batch tile"
    grid = (B // tb,)

    out_dim = input_dim + 2 * latent_dim

    # -- advisory cost estimate for the XLA scheduler --
    flops = 2 * B * sum(di * do for di, do in (w.shape for w in ws))
    bytes_accessed = (4 * x.size + 4 * eps.size
                      + w_slab.size * w_slab.dtype.itemsize
                      + 4 * b_slab.size + 4 * B * out_dim)
    cost = pl.CostEstimate(flops=flops,
                           transcendentals=B * latent_dim,
                           bytes_accessed=bytes_accessed)

    kernel = functools.partial(_vae_fwd_kernel, layout=layout,
                               latent_dim=latent_dim,
                               compute_dtype=compute_dtype)

    out = pl.pallas_call(
        kernel,
        grid=grid,
        out_shape=jax.ShapeDtypeStruct((B, out_dim), jnp.float32),
        in_specs=[
            pl.BlockSpec((tb, input_dim), lambda i: (i, 0)),    # x (moves)
            pl.BlockSpec((tb, latent_dim), lambda i: (i, 0)),   # eps (moves)
            pl.BlockSpec((R, C), lambda i: (0, 0)),             # weight slab
            pl.BlockSpec((1, C), lambda i: (0, 0)),             # bias slab
        ],
        out_specs=pl.BlockSpec((tb, out_dim), lambda i: (i, 0)),  # [x_hat|mu|lv]
        compiler_params=pltpu.CompilerParams(
            dimension_semantics=("parallel",)),
        cost_estimate=cost,
    )(x, eps, w_slab, b_slab)

    # -- lane-dense slab split on the host (cheap XLA slices) --
    x_hat = out[:, :input_dim]
    mu = out[:, input_dim:input_dim + latent_dim]
    log_var = out[:, input_dim + latent_dim:]
    return x_hat, mu, log_var


# ----------------------------- parameter setup ----------------------------- #

def _init_linear(key, d_in, d_out):
    """PyTorch-style nn.Linear init: U(-1/sqrt(fan_in), 1/sqrt(fan_in))."""
    kw, kb = jax.random.split(key)
    bound = 1.0 / jnp.sqrt(jnp.float32(d_in))
    w = jax.random.uniform(kw, (d_in, d_out), jnp.float32, -bound, bound)
    b = jax.random.uniform(kb, (d_out,), jnp.float32, -bound, bound)
    return w, b


def _bn_affine(dim):
    """Eval-mode BN with freshly-initialized stats as per-feature scale/shift."""
    gamma = jnp.ones((dim,), jnp.float32)
    beta = jnp.zeros((dim,), jnp.float32)
    running_mean = jnp.zeros((dim,), jnp.float32)
    running_var = jnp.ones((dim,), jnp.float32)
    scale = gamma * jax.lax.rsqrt(running_var + BN_EPS)
    shift = beta - running_mean * scale
    return scale, shift


def init_vae_params(key, input_dim, layers, latent_dim):
    keys = jax.random.split(key, 7)
    p = {}
    # encoder
    p["enc1_w"], p["enc1_b"] = _init_linear(keys[0], input_dim, layers[0])
    p["enc1_scale"], p["enc1_shift"] = _bn_affine(layers[0])
    p["enc2_w"], p["enc2_b"] = _init_linear(keys[1], layers[0], layers[1])
    p["enc2_scale"], p["enc2_shift"] = _bn_affine(layers[1])
    p["mu_w"], p["mu_b"] = _init_linear(keys[2], layers[1], latent_dim)
    p["lv_w"], p["lv_b"] = _init_linear(keys[3], layers[1], latent_dim)
    # decoder (layers reversed)
    rlayers = layers[::-1]
    p["dec1_w"], p["dec1_b"] = _init_linear(keys[4], latent_dim, rlayers[0])
    p["dec1_scale"], p["dec1_shift"] = _bn_affine(rlayers[0])
    p["dec2_w"], p["dec2_b"] = _init_linear(keys[5], rlayers[0], rlayers[1])
    p["dec2_scale"], p["dec2_shift"] = _bn_affine(rlayers[1])
    p["out_w"], p["out_b"] = _init_linear(keys[6], rlayers[1], input_dim)
    return p


# --------------------------- pure-JAX reference ----------------------------- #

def vae_forward_ref(p, x, eps):
    def lba(x, w, b, s, sh, relu):
        y = (x @ w + b) * s + sh
        return jnp.maximum(y, 0.0) if relu else y

    h = lba(x, p["enc1_w"], p["enc1_b"], p["enc1_scale"], p["enc1_shift"], True)
    h = lba(h, p["enc2_w"], p["enc2_b"], p["enc2_scale"], p["enc2_shift"], True)
    mu = h @ p["mu_w"] + p["mu_b"]
    log_var = h @ p["lv_w"] + p["lv_b"]
    z = mu + eps * jnp.exp(0.5 * log_var)
    d = lba(z, p["dec1_w"], p["dec1_b"], p["dec1_scale"], p["dec1_shift"], True)
    d = lba(d, p["dec2_w"], p["dec2_b"], p["dec2_scale"], p["dec2_shift"], True)
    x_hat = d @ p["out_w"] + p["out_b"]
    return x_hat, mu, log_var


# ----------------------------------- main ----------------------------------- #

if __name__ == "__main__":
    # Small shapes consistent with the module's MLP structure
    # (params override: input_dim=64, layers=[48, 32], latent_dim=16, batch=8).
    INPUT_DIM = 64
    LAYERS = [48, 32]
    LATENT_DIM = 16
    BATCH = 8

    key = jax.random.PRNGKey(0)
    k_param, k_x, k_eps = jax.random.split(key, 3)

    params = init_vae_params(k_param, INPUT_DIM, LAYERS, LATENT_DIM)
    x = jax.random.normal(k_x, (BATCH, INPUT_DIM), jnp.float32)
    eps = jax.random.normal(k_eps, (BATCH, LATENT_DIM), jnp.float32)  # torch.randn_like(std)

    x_hat_r, mu_r, log_var_r = vae_forward_ref(params, x, eps)

    # --- f32 MXU path: tight check against the pure-JAX reference ---
    fwd_f32 = jax.jit(functools.partial(vae_forward, compute_dtype=jnp.float32))
    x_hat, mu, log_var = fwd_f32(params, x, eps)
    jax.block_until_ready((x_hat, mu, log_var))
    assert x_hat.shape == (BATCH, INPUT_DIM)
    assert mu.shape == (BATCH, LATENT_DIM) and log_var.shape == (BATCH, LATENT_DIM)
    assert jnp.allclose(x_hat, x_hat_r, rtol=1e-4, atol=1e-4)
    assert jnp.allclose(mu, mu_r, rtol=1e-4, atol=1e-4)
    assert jnp.allclose(log_var, log_var_r, rtol=1e-4, atol=1e-4)

    # --- bf16 MXU operands (default, v6e/v7x-friendly): f32 accumulation,
    #     error bounded by bf16 input rounding -> looser tolerance ---
    fwd = jax.jit(vae_forward)
    x_hat_b, mu_b, log_var_b = fwd(params, x, eps)
    jax.block_until_ready((x_hat_b, mu_b, log_var_b))
    assert jnp.allclose(x_hat_b, x_hat_r, rtol=5e-2, atol=5e-2)
    assert jnp.allclose(mu_b, mu_r, rtol=5e-2, atol=5e-2)
    assert jnp.allclose(log_var_b, log_var_r, rtol=5e-2, atol=5e-2)

    print("KERNEL_OK")
</pallas_src>

<mosaic_0001>
module attributes {stable_mosaic.version = 11 : i64} {
  func.func @_vae_fwd_kernel(%arg0: i32, %arg1: memref<8x64xf32, #tpu.memory_space<vmem>>, %arg2: memref<8x16xf32, #tpu.memory_space<vmem>>, %arg3: memref<64x768xf32, #tpu.memory_space<vmem>>, %arg4: memref<1x768xf32, #tpu.memory_space<vmem>>, %arg5: memref<8x96xf32, #tpu.memory_space<vmem>>) attributes {dimension_semantics = [#tpu.dimension_semantics<parallel>], iteration_bounds = array<i64: 1>, scalar_prefetch = 0 : i64, scratch_operands = 0 : i64, tpu.core_type = #tpu.core_type<tc>, window_params = [{transform_indices = @transform_0, window_bounds = array<i64: 8, 64>}, {transform_indices = @transform_1, window_bounds = array<i64: 8, 16>}, {pipeline_mode = #tpu.pipeline_mode<synchronous>, transform_indices = @transform_2, window_bounds = array<i64: 64, 768>}, {pipeline_mode = #tpu.pipeline_mode<synchronous>, transform_indices = @transform_3, window_bounds = array<i64: 1, 768>}, {transform_indices = @transform_4, window_bounds = array<i64: 8, 96>}]} {
    %c0 = arith.constant 0 : index
    %c0_0 = arith.constant 0 : index
    %0 = vector.load %arg1[%c0, %c0_0] : memref<8x64xf32, #tpu.memory_space<vmem>>, vector<8x64xf32>
    %c0_1 = arith.constant 0 : index
    %c0_2 = arith.constant 0 : index
    %1 = vector.load %arg3[%c0_1, %c0_2] : memref<64x768xf32, #tpu.memory_space<vmem>>, vector<64x48xf32>
    %c0_3 = arith.constant 0 : index
    %c0_4 = arith.constant 0 : index
    %2 = vector.load %arg4[%c0_3, %c0_4] : memref<1x768xf32, #tpu.memory_space<vmem>>, vector<1x48xf32>
    %cst = arith.constant dense<0.000000e+00> : vector<8x48xf32>
    %3 = tpu.matmul %0, %1, %cst {dimension_numbers = #tpu.dot_dimension_numbers<[1], [0], [0], [1], [0, 0, 1, 1], [], []>} : vector<8x64xf32>, vector<64x48xf32>, vector<8x48xf32> -> vector<8x48xf32>
    %4 = vector.broadcast %2 : vector<1x48xf32> to vector<8x48xf32>
    %5 = arith.addf %3, %4 : vector<8x48xf32>
    %cst_5 = arith.constant 0.000000e+00 : f32
    %6 = vector.broadcast %cst_5 : f32 to vector<8x48xf32>
    %7 = arith.maximumf %5, %6 : vector<8x48xf32>
    %c0_6 = arith.constant 0 : index
    %c128 = arith.constant 128 : index
    %8 = vector.load %arg3[%c0_6, %c128] : memref<64x768xf32, #tpu.memory_space<vmem>>, vector<48x32xf32>
    %c0_7 = arith.constant 0 : index
    %c128_8 = arith.constant 128 : index
    %9 = vector.load %arg4[%c0_7, %c128_8] : memref<1x768xf32, #tpu.memory_space<vmem>>, vector<1x32xf32>
    %cst_9 = arith.constant dense<0.000000e+00> : vector<8x32xf32>
    %10 = tpu.matmul %7, %8, %cst_9 {dimension_numbers = #tpu.dot_dimension_numbers<[1], [0], [0], [1], [0, 0, 1, 1], [], []>} : vector<8x48xf32>, vector<48x32xf32>, vector<8x32xf32> -> vector<8x32xf32>
    %11 = vector.broadcast %9 : vector<1x32xf32> to vector<8x32xf32>
    %12 = arith.addf %10, %11 : vector<8x32xf32>
    %cst_10 = arith.constant 0.000000e+00 : f32
    %13 = vector.broadcast %cst_10 : f32 to vector<8x32xf32>
    %14 = arith.maximumf %12, %13 : vector<8x32xf32>
    %c0_11 = arith.constant 0 : index
    %c256 = arith.constant 256 : index
    %15 = vector.load %arg3[%c0_11, %c256] : memref<64x768xf32, #tpu.memory_space<vmem>>, vector<32x32xf32>
    %c0_12 = arith.constant 0 : index
    %c256_13 = arith.constant 256 : index
    %16 = vector.load %arg4[%c0_12, %c256_13] : memref<1x768xf32, #tpu.memory_space<vmem>>, vector<1x32xf32>
    %cst_14 = arith.constant dense<0.000000e+00> : vector<8x32xf32>
    %17 = tpu.matmul %14, %15, %cst_14 {dimension_numbers = #tpu.dot_dimension_numbers<[1], [0], [0], [1], [0, 0, 1, 1], [], []>} : vector<8x32xf32>, vector<32x32xf32>, vector<8x32xf32> -> vector<8x32xf32>
    %18 = vector.broadcast %16 : vector<1x32xf32> to vector<8x32xf32>
    %19 = arith.addf %17, %18 : vector<8x32xf32>
    %20 = vector.extract_strided_slice %19 {offsets = [0, 0], sizes = [8, 16], strides = [1, 1]} : vector<8x32xf32> to vector<8x16xf32>
    %21 = vector.extract_strided_slice %19 {offsets = [0, 16], sizes = [8, 16], strides = [1, 1]} : vector<8x32xf32> to vector<8x16xf32>
    %c0_15 = arith.constant 0 : index
    %c0_16 = arith.constant 0 : index
    %22 = vector.load %arg2[%c0_15, %c0_16] : memref<8x16xf32, #tpu.memory_space<vmem>>, vector<8x16xf32>
    %cst_17 = arith.constant 5.000000e-01 : f32
    %23 = vector.broadcast %cst_17 : f32 to vector<8x16xf32>
    %24 = arith.mulf %23, %21 : vector<8x16xf32>
    %25 = math.exp %24 : vector<8x16xf32>
    %26 = arith.mulf %22, %25 : vector<8x16xf32>
    %27 = arith.addf %20, %26 : vector<8x16xf32>
    %c0_18 = arith.constant 0 : index
    %c384 = arith.constant 384 : index
    %28 = vector.load %arg3[%c0_18, %c384] : memref<64x768xf32, #tpu.memory_space<vmem>>, vector<16x32xf32>
    %c0_19 = arith.constant 0 : index
    %c384_20 = arith.constant 384 : index
    %29 = vector.load %arg4[%c0_19, %c384_20] : memref<1x768xf32, #tpu.memory_space<vmem>>, vector<1x32xf32>
    %cst_21 = arith.constant dense<0.000000e+00> : vector<8x32xf32>
    %30 = tpu.matmul %27, %28, %cst_21 {dimension_numbers = #tpu.dot_dimension_numbers<[1], [0], [0], [1], [0, 0, 1, 1], [], []>} : vector<8x16xf32>, vector<16x32xf32>, vector<8x32xf32> -> vector<8x32xf32>
    %31 = vector.broadcast %29 : vector<1x32xf32> to vector<8x32xf32>
    %32 = arith.addf %30, %31 : vector<8x32xf32>
    %cst_22 = arith.constant 0.000000e+00 : f32
    %33 = vector.broadcast %cst_22 : f32 to vector<8x32xf32>
    %34 = arith.maximumf %32, %33 : vector<8x32xf32>
    %c0_23 = arith.constant 0 : index
    %c512 = arith.constant 512 : index
    %35 = vector.load %arg3[%c0_23, %c512] : memref<64x768xf32, #tpu.memory_space<vmem>>, vector<32x48xf32>
    %c0_24 = arith.constant 0 : index
    %c512_25 = arith.constant 512 : index
    %36 = vector.load %arg4[%c0_24, %c512_25] : memref<1x768xf32, #tpu.memory_space<vmem>>, vector<1x48xf32>
    %cst_26 = arith.constant dense<0.000000e+00> : vector<8x48xf32>
    %37 = tpu.matmul %34, %35, %cst_26 {dimension_numbers = #tpu.dot_dimension_numbers<[1], [0], [0], [1], [0, 0, 1, 1], [], []>} : vector<8x32xf32>, vector<32x48xf32>, vector<8x48xf32> -> vector<8x48xf32>
    %38 = vector.broadcast %36 : vector<1x48xf32> to vector<8x48xf32>
    %39 = arith.addf %37, %38 : vector<8x48xf32>
    %cst_27 = arith.constant 0.000000e+00 : f32
    %40 = vector.broadcast %cst_27 : f32 to vector<8x48xf32>
    %41 = arith.maximumf %39, %40 : vector<8x48xf32>
    %c0_28 = arith.constant 0 : index
    %c640 = arith.constant 640 : index
    %42 = vector.load %arg3[%c0_28, %c640] : memref<64x768xf32, #tpu.memory_space<vmem>>, vector<48x64xf32>
    %c0_29 = arith.constant 0 : index
    %c640_30 = arith.constant 640 : index
    %43 = vector.load %arg4[%c0_29, %c640_30] : memref<1x768xf32, #tpu.memory_space<vmem>>, vector<1x64xf32>
    %cst_31 = arith.constant dense<0.000000e+00> : vector<8x64xf32>
    %44 = tpu.matmul %41, %42, %cst_31 {dimension_numbers = #tpu.dot_dimension_numbers<[1], [0], [0], [1], [0, 0, 1, 1], [], []>} : vector<8x48xf32>, vector<48x64xf32>, vector<8x64xf32> -> vector<8x64xf32>
    %45 = vector.broadcast %43 : vector<1x64xf32> to vector<8x64xf32>
    %46 = arith.addf %44, %45 : vector<8x64xf32>
    %47 = tpu.concatenate %46, %19 in 1 : vector<8x64xf32>, vector<8x32xf32> -> vector<8x96xf32>
    %c0_32 = arith.constant 0 : index
    %c0_33 = arith.constant 0 : index
    %48 = vector.load %arg5[%c0_32, %c0_33] : memref<8x96xf32, #tpu.memory_space<vmem>>, vector<8x96xf32>
    tpu.vector_store %arg5[%c0_32, %c0_33], %47 {strides = array<i32>} : memref<8x96xf32, #tpu.memory_space<vmem>>, vector<8x96xf32>,
    return
  }
  func.func @transform_0(%arg0: i32) -> (i32, i32) {
    %c0_i32 = arith.constant 0 : i32
    %c0_i32_0 = arith.constant 0 : i32
    return %arg0, %c0_i32 : i32, i32
  }
  func.func @transform_1(%arg0: i32) -> (i32, i32) {
    %c0_i32 = arith.constant 0 : i32
    %c0_i32_0 = arith.constant 0 : i32
    return %arg0, %c0_i32 : i32, i32
  }
  func.func @transform_2(%arg0: i32) -> (i32, i32) {
    %c0_i32 = arith.constant 0 : i32
    %c0_i32_0 = arith.constant 0 : i32
    %c0_i32_1 = arith.constant 0 : i32
    return %c0_i32, %c0_i32_0 : i32, i32
  }
  func.func @transform_3(%arg0: i32) -> (i32, i32) {
    %c0_i32 = arith.constant 0 : i32
    %c0_i32_0 = arith.constant 0 : i32
    %c0_i32_1 = arith.constant 0 : i32
    return %c0_i32, %c0_i32_0 : i32, i32
  }
  func.func @transform_4(%arg0: i32) -> (i32, i32) {
    %c0_i32 = arith.constant 0 : i32
    %c0_i32_0 = arith.constant 0 : i32
    return %arg0, %c0_i32 : i32, i32
  }
}

</mosaic_0001>

<llo_original>
// kernel: vae_forward.1
$region0: #{vae_forward.1}
  #allocation0 [shape = 'u32[]', space=smem, size = 0x4, offset = 0x4, fixed_abs, tag = 'smem constant byte address 0x4 - core index']
  #allocation1 [shape = 'u32[144,128]{1,0:T(1,128)}', space=vmem, size = 0x12000, scoped, tag = 'internal scratch']
  %s0 = inlined_call_operand.vmem [shape: f32[8,64], index: 0, kind: input, shape index: {}]
  %s1 = inlined_call_operand.vmem [shape: f32[8,16], index: 1, kind: input, shape index: {}]
  %s2 = inlined_call_operand.vmem [shape: f32[64,768], index: 2, kind: input, shape index: {}]
  %s3 = inlined_call_operand.vmem [shape: f32[1,768], index: 3, kind: input, shape index: {}]
  %s4 = inlined_call_operand.vmem [shape: f32[8,96], index: 4, kind: output, shape index: {}]
  %s5 = sld [smem:[#allocation0]]
  $region26: #{vae_forward.1} parent=0
    _
  %s7 = ssub.s32 1, %s5
  %s8 = scalar_select 0, %s7, %s5
  // Predicated region
  $region2: #{vae_forward.1} parent=0 // pred_check
    _
  $region3: #{vae_forward.1} parent=0 // pred_check_branch
    %10 = sbr.rel (0) target = $region5
  $region4: #{vae_forward.1} parent=0 // pred_region
    _
  $region5: #{vae_forward.1} parent=0 // pred_fallthru
    _
  // Predicated region
  $region6: #{vae_forward.1} parent=0 // pred_check
    _
  $region7: #{vae_forward.1} parent=0 // pred_check_branch
    %12 = sbr.rel (0) target = $region9
  $region8: #{vae_forward.1} parent=0 // pred_region
    _
  $region9: #{vae_forward.1} parent=0 // pred_fallthru
    _
  // Predicated region
  $region10: #{vae_forward.1} parent=0 // pred_check
    _
  $region11: #{vae_forward.1} parent=0 // pred_check_branch
    %14 = sbr.rel (0) target = $region13
  $region12: #{vae_forward.1} parent=0 // pred_region
    _
  $region13: #{vae_forward.1} parent=0 // pred_fallthru
    _
  // Predicated region
  $region14: #{vae_forward.1} parent=0 // pred_check
    _
  $region15: #{vae_forward.1} parent=0 // pred_check_branch
    %16 = sbr.rel (0) target = $region17
  $region16: #{vae_forward.1} parent=0 // pred_region
    _
  $region17: #{vae_forward.1} parent=0 // pred_fallthru
    _
  %v17 = vld [vmem:[%s0] sm:$0xff]
  %v18 = vld [vmem:[%s2] sm:$0xff]
  %v19 = vld [vmem:[%s2 + $0x30] sm:$0xff]
  %v20 = vld [vmem:[%s2 + $0x60] sm:$0xff]
  %v21 = vld [vmem:[%s2 + $0x90] sm:$0xff]
  %v22 = vld [vmem:[%s2 + $0xc0] sm:$0xff]
  %v23 = vld [vmem:[%s2 + $0xf0] sm:$0xff]
  %v24 = vld [vmem:[%s2 + $0x120] sm:$0xff]
  %v25 = vld [vmem:[%s2 + $0x150] sm:$0xff]
  %v26 = vld [vmem:[%s3] sm:$0x1]
  %v28 = vlaneseq
  %v29 = vshrl.u32 %v28, 7
  %v30 = vsub.s32 0, %v29
  %v31 = vrot.slane %v26, %v30
  %vm33 = vcmask 523264
  %v35 = vsel %vm33, %v17, 0
  %37 = vmatprep.subr.mxu0 0.0
  %38 = vmatpush1.msra.mxu0 %v18
  %39 = vmatprep.subr.mxu0 0.0
  %40 = vmatpush1.msra.mxu0 %v19
  %41 = vmatprep.subr.mxu0 0.0
  %42 = vmatpush1.msra.mxu0 %v20
  %43 = vmatprep.subr.mxu0 0.0
  %44 = vmatpush1.msra.mxu0 %v21
  %45 = vmatprep.subr.mxu0 0.0
  %46 = vmatpush1.msra.mxu0 %v22
  %47 = vmatprep.subr.mxu0 0.0
  %48 = vmatpush1.msra.mxu0 %v23
  %49 = vmatprep.subr.mxu0 0.0
  %50 = vmatpush1.msra.mxu0 %v24
  %51 = vmatprep.subr.mxu0 0.0
  %52 = vmatpush1.msra.mxu0 %v25
  %53 = vmatprep.subr.mxu0 0.0
  %54 = vmatpush1.msra.mxu0 0.0
  %55 = vmatprep.subr.mxu0 0.0
  %56 = vmatpush1.msra.mxu0 0.0
  %57 = vmatprep.subr.mxu0 0.0
  %58 = vmatpush1.msra.mxu0 0.0
  %59 = vmatprep.subr.mxu0 0.0
  %60 = vmatpush1.msra.mxu0 0.0
  %61 = vmatprep.subr.mxu0 0.0
  %62 = vmatpush1.msra.mxu0 0.0
  %63 = vmatprep.subr.mxu0 0.0
  %64 = vmatpush1.msra.mxu0 0.0
  %65 = vmatprep.subr.mxu0 0.0
  %66 = vmatpush1.msra.mxu0 0.0
  %67 = vmatprep.subr.mxu0 0.0
  %68 = vmatpush1.msra.mxu0 0.0
  %69 = vmatprep.subr.mxu0 0.0
  %70 = vmatpush1.msra.mxu0 0.0
  %71 = vmatprep.subr.mxu0 0.0
  %72 = vmatpush1.msra.mxu0 0.0
  %73 = vmatprep.subr.mxu0 0.0
  %74 = vmatpush1.msra.mxu0 0.0
  %75 = vmatprep.subr.mxu0 0.0
  %76 = vmatpush1.msra.mxu0 0.0
  %77 = vmatprep.subr.mxu0 0.0
  %78 = vmatpush1.msra.mxu0 0.0
  %79 = vmatprep.subr.mxu0 0.0
  %80 = vmatpush1.msra.mxu0 0.0
  %81 = vmatprep.subr.mxu0 0.0
  %82 = vmatpush1.msra.mxu0 0.0
  %83 = vmatprep.subr.mxu0 0.0
  %84 = vmatpush1.msra.mxu0 0.0
  %85 = vmatprep.subr.mxu0 0.0
  %86 = vmatpush1.msra.mxu0 0.0
  %87 = vmatprep.subr.mxu0 0.0
  %88 = vmatpush1.msra.mxu0 0.0
  %89 = vmatprep.subr.mxu0 0.0
  %90 = vmatpush1.msra.mxu0 0.0
  %91 = vmatprep.subr.mxu0 0.0
  %92 = vmatpush1.msra.mxu0 0.0
  %93 = vmatprep.subr.mxu0 0.0
  %94 = vmatpush1.msra.mxu0 0.0
  %95 = vmatprep.subr.mxu0 0.0
  %96 = vmatpush1.msra.mxu0 0.0
  %97 = vmatprep.subr.mxu0 0.0
  %98 = vmatpush1.msra.mxu0 0.0
  %99 = vmatprep.subr.mxu0 0.0
  %100 = vmatpush1.msra.mxu0 0.0
  %101 = vmatprep.mubr.f32.mxu0 0.0
  %102 = vmatmul.mubr.f32.gmra.mrb[0].mxu0 %v35
  %v103 = vpop.f32.mrb[0].mxu0
  %v104 = vadd.f32 %v31, %v103
  %v105 = vpop.f32.mrb[0].mxu0
  %106 = vdwg.mxu0
  %v107 = vmax.f32 %v104, 0.0
  %v108 = vld [vmem:[%s2 + $0x8] sm:$0xff]
  %v109 = vld [vmem:[%s2 + $0x38] sm:$0xff]
  %v110 = vld [vmem:[%s2 + $0x68] sm:$0xff]
  %v111 = vld [vmem:[%s2 + $0x98] sm:$0xff]
  %v112 = vld [vmem:[%s2 + $0xc8] sm:$0xff]
  %v113 = vld [vmem:[%s2 + $0xf8] sm:$0xff]
  %v114 = vld [vmem:[%s3 + $0x1] sm:$0x1]
  %v116 = vlaneseq
  %v117 = vshrl.u32 %v116, 7
  %v118 = vsub.s32 0, %v117
  %v119 = vrot.slane %v114, %v118
  %vm121 = vcmask 392192
  %v123 = vsel %vm121, %v107, 0
  %125 = vmatprep.subr.mxu0 0.0
  %126 = vmatpush1.msra.mxu0 %v108
  %127 = vmatprep.subr.mxu0 0.0
  %128 = vmatpush1.msra.mxu0 %v109
  %129 = vmatprep.subr.mxu0 0.0
  %130 = vmatpush1.msra.mxu0 %v110
  %131 = vmatprep.subr.mxu0 0.0
  %132 = vmatpush1.msra.mxu0 %v111
  %133 = vmatprep.subr.mxu0 0.0
  %134 = vmatpush1.msra.mxu0 %v112
  %135 = vmatprep.subr.mxu0 0.0
  %136 = vmatpush1.msra.mxu0 %v113
  %137 = vmatprep.subr.mxu0 0.0
  %138 = vmatpush1.msra.mxu0 0.0
  %139 = vmatprep.subr.mxu0 0.0
  %140 = vmatpush1.msra.mxu0 0.0
  %141 = vmatprep.subr.mxu0 0.0
  %142 = vmatpush1.msra.mxu0 0.0
  %143 = vmatprep.subr.mxu0 0.0
  %144 = vmatpush1.msra.mxu0 0.0
  %145 = vmatprep.subr.mxu0 0.0
  %146 = vmatpush1.msra.mxu0 0.0
  %147 = vmatprep.subr.mxu0 0.0
  %148 = vmatpush1.msra.mxu0 0.0
  %149 = vmatprep.subr.mxu0 0.0
  %150 = vmatpush1.msra.mxu0 0.0
  %151 = vmatprep.subr.mxu0 0.0
  %152 = vmatpush1.msra.mxu0 0.0
  %153 = vmatprep.subr.mxu0 0.0
  %154 = vmatpush1.msra.mxu0 0.0
  %155 = vmatprep.subr.mxu0 0.0
  %156 = vmatpush1.msra.mxu0 0.0
  %157 = vmatprep.subr.mxu0 0.0
  %158 = vmatpush1.msra.mxu0 0.0
  %159 = vmatprep.subr.mxu0 0.0
  %160 = vmatpush1.msra.mxu0 0.0
  %161 = vmatprep.subr.mxu0 0.0
  %162 = vmatpush1.msra.mxu0 0.0
  %163 = vmatprep.subr.mxu0 0.0
  %164 = vmatpush1.msra.mxu0 0.0
  %165 = vmatprep.subr.mxu0 0.0
  %166 = vmatpush1.msra.mxu0 0.0
  %167 = vmatprep.subr.mxu0 0.0
  %168 = vmatpush1.msra.mxu0 0.0
  %169 = vmatprep.subr.mxu0 0.0
  %170 = vmatpush1.msra.mxu0 0.0
  %171 = vmatprep.subr.mxu0 0.0
  %172 = vmatpush1.msra.mxu0 0.0
  %173 = vmatprep.subr.mxu0 0.0
  %174 = vmatpush1.msra.mxu0 0.0
  %175 = vmatprep.subr.mxu0 0.0
  %176 = vmatpush1.msra.mxu0 0.0
  %177 = vmatprep.subr.mxu0 0.0
  %178 = vmatpush1.msra.mxu0 0.0
  %179 = vmatprep.subr.mxu0 0.0
  %180 = vmatpush1.msra.mxu0 0.0
  %181 = vmatprep.subr.mxu0 0.0
  %182 = vmatpush1.msra.mxu0 0.0
  %183 = vmatprep.subr.mxu0 0.0
  %184 = vmatpush1.msra.mxu0 0.0
  %185 = vmatprep.subr.mxu0 0.0
  %186 = vmatpush1.msra.mxu0 0.0
  %187 = vmatprep.subr.mxu0 0.0
  %188 = vmatpush1.msra.mxu0 0.0
  %189 = vmatprep.mubr.f32.mxu0 0.0
  %190 = vmatmul.mubr.f32.gmra.mrb[0].mxu0 %v123
  %v191 = vpop.f32.mrb[0].mxu0
  %v192 = vadd.f32 %v119, %v191
  %v193 = vpop.f32.mrb[0].mxu0
  %194 = vdwg.mxu0
  %v195 = vmax.f32 %v192, 0.0
  %v196 = vld [vmem:[%s2 + $0x10] sm:$0xff]
  %v197 = vld [vmem:[%s2 + $0x40] sm:$0xff]
  %v198 = vld [vmem:[%s2 + $0x70] sm:$0xff]
  %v199 = vld [vmem:[%s2 + $0xa0] sm:$0xff]
  %v200 = vld [vmem:[%s3 + $0x2] sm:$0x1]
  %v202 = vlaneseq
  %v203 = vshrl.u32 %v202, 7
  %v204 = vsub.s32 0, %v203
  %v205 = vrot.slane %v200, %v204
  %vm207 = vcmask 261120
  %v209 = vsel %vm207, %v195, 0
  %211 = vmatprep.subr.mxu0 0.0
  %212 = vmatpush1.msra.mxu0 %v196
  %213 = vmatprep.subr.mxu0 0.0
  %214 = vmatpush1.msra.mxu0 %v197
  %215 = vmatprep.subr.mxu0 0.0
  %216 = vmatpush1.msra.mxu0 %v198
  %217 = vmatprep.subr.mxu0 0.0
  %218 = vmatpush1.msra.mxu0 %v199
  %219 = vmatprep.subr.mxu0 0.0
  %220 = vmatpush1.msra.mxu0 0.0
  %221 = vmatprep.subr.mxu0 0.0
  %222 = vmatpush1.msra.mxu0 0.0
  %223 = vmatprep.subr.mxu0 0.0
  %224 = vmatpush1.msra.mxu0 0.0
  %225 = vmatprep.subr.mxu0 0.0
  %226 = vmatpush1.msra.mxu0 0.0
  %227 = vmatprep.subr.mxu0 0.0
  %228 = vmatpush1.msra.mxu0 0.0
  %229 = vmatprep.subr.mxu0 0.0
  %230 = vmatpush1.msra.mxu0 0.0
  %231 = vmatprep.subr.mxu0 0.0
  %232 = vmatpush1.msra.mxu0 0.0
  %233 = vmatprep.subr.mxu0 0.0
  %234 = vmatpush1.msra.mxu0 0.0
  %235 = vmatprep.subr.mxu0 0.0
  %236 = vmatpush1.msra.mxu0 0.0
  %237 = vmatprep.subr.mxu0 0.0
  %238 = vmatpush1.msra.mxu0 0.0
  %239 = vmatprep.subr.mxu0 0.0
  %240 = vmatpush1.msra.mxu0 0.0
  %241 = vmatprep.subr.mxu0 0.0
  %242 = vmatpush1.msra.mxu0 0.0
  %243 = vmatprep.subr.mxu0 0.0
  %244 = vmatpush1.msra.mxu0 0.0
  %245 = vmatprep.subr.mxu0 0.0
  %246 = vmatpush1.msra.mxu0 0.0
  %247 = vmatprep.subr.mxu0 0.0
  %248 = vmatpush1.msra.mxu0 0.0
  %249 = vmatprep.subr.mxu0 0.0
  %250 = vmatpush1.msra.mxu0 0.0
  %251 = vmatprep.subr.mxu0 0.0
  %252 = vmatpush1.msra.mxu0 0.0
  %253 = vmatprep.subr.mxu0 0.0
  %254 = vmatpush1.msra.mxu0 0.0
  %255 = vmatprep.subr.mxu0 0.0
  %256 = vmatpush1.msra.mxu0 0.0
  %257 = vmatprep.subr.mxu0 0.0
  %258 = vmatpush1.msra.mxu0 0.0
  %259 = vmatprep.subr.mxu0 0.0
  %260 = vmatpush1.msra.mxu0 0.0
  %261 = vmatprep.subr.mxu0 0.0
  %262 = vmatpush1.msra.mxu0 0.0
  %263 = vmatprep.subr.mxu0 0.0
  %264 = vmatpush1.msra.mxu0 0.0
  %265 = vmatprep.subr.mxu0 0.0
  %266 = vmatpush1.msra.mxu0 0.0
  %267 = vmatprep.subr.mxu0 0.0
  %268 = vmatpush1.msra.mxu0 0.0
  %269 = vmatprep.subr.mxu0 0.0
  %270 = vmatpush1.msra.mxu0 0.0
  %271 = vmatprep.subr.mxu0 0.0
  %272 = vmatpush1.msra.mxu0 0.0
  %273 = vmatprep.subr.mxu0 0.0
  %274 = vmatpush1.msra.mxu0 0.0
  %275 = vmatprep.mubr.f32.mxu0 0.0
  %276 = vmatmul.mubr.f32.gmra.mrb[0].mxu0 %v209
  %v277 = vpop.f32.mrb[0].mxu0
  %v278 = vadd.f32 %v205, %v277
  %v279 = vpop.f32.mrb[0].mxu0
  %280 = vdwg.mxu0
  %v281 = vld [vmem:[%s1] sm:$0xff]
  %v282 = vmul.f32 %v278, 0.5
  %v283 = vmul.f32 %v282, 1.442695
  %v284 = vpow.pop %v283
  %286 = vrot.lane.b32.xlu0 %v284, 112
  %v287 = vpop.permute.xlu0 %286
  %v289 = vmul.f32 %v281, %v287
  %v290 = vadd.f32 %v278, %v289
  %v291 = vld [vmem:[%s2 + $0x18] sm:$0xff]
  %v292 = vld [vmem:[%s2 + $0x48] sm:$0xff]
  %v293 = vld [vmem:[%s3 + $0x3] sm:$0x1]
  %v295 = vlaneseq
  %v296 = vshrl.u32 %v295, 7
  %v297 = vsub.s32 0, %v296
  %v298 = vrot.slane %v293, %v297
  %vm300 = vcmask 130048
  %v302 = vsel %vm300, %v290, 0
  %304 = vmatprep.subr.mxu0 0.0
  %305 = vmatpush1.msra.mxu0 %v291
  %306 = vmatprep.subr.mxu0 0.0
  %307 = vmatpush1.msra.mxu0 %v292
  %308 = vmatprep.subr.mxu0 0.0
  %309 = vmatpush1.msra.mxu0 0.0
  %310 = vmatprep.subr.mxu0 0.0
  %311 = vmatpush1.msra.mxu0 0.0
  %312 = vmatprep.subr.mxu0 0.0
  %313 = vmatpush1.msra.mxu0 0.0
  %314 = vmatprep.subr.mxu0 0.0
  %315 = vmatpush1.msra.mxu0 0.0
  %316 = vmatprep.subr.mxu0 0.0
  %317 = vmatpush1.msra.mxu0 0.0
  %318 = vmatprep.subr.mxu0 0.0
  %319 = vmatpush1.msra.mxu0 0.0
  %320 = vmatprep.subr.mxu0 0.0
  %321 = vmatpush1.msra.mxu0 0.0
  %322 = vmatprep.subr.mxu0 0.0
  %323 = vmatpush1.msra.mxu0 0.0
  %324 = vmatprep.subr.mxu0 0.0
  %325 = vmatpush1.msra.mxu0 0.0
  %326 = vmatprep.subr.mxu0 0.0
  %327 = vmatpush1.msra.mxu0 0.0
  %328 = vmatprep.subr.mxu0 0.0
  %329 = vmatpush1.msra.mxu0 0.0
  %330 = vmatprep.subr.mxu0 0.0
  %331 = vmatpush1.msra.mxu0 0.0
  %332 = vmatprep.subr.mxu0 0.0
  %333 = vmatpush1.msra.mxu0 0.0
  %334 = vmatprep.subr.mxu0 0.0
  %335 = vmatpush1.msra.mxu0 0.0
  %336 = vmatprep.subr.mxu0 0.0
  %337 = vmatpush1.msra.mxu0 0.0
  %338 = vmatprep.subr.mxu0 0.0
  %339 = vmatpush1.msra.mxu0 0.0
  %340 = vmatprep.subr.mxu0 0.0
  %341 = vmatpush1.msra.mxu0 0.0
  %342 = vmatprep.subr.mxu0 0.0
  %343 = vmatpush1.msra.mxu0 0.0
  %344 = vmatprep.subr.mxu0 0.0
  %345 = vmatpush1.msra.mxu0 0.0
  %346 = vmatprep.subr.mxu0 0.0
  %347 = vmatpush1.msra.mxu0 0.0
  %348 = vmatprep.subr.mxu0 0.0
  %349 = vmatpush1.msra.mxu0 0.0
  %350 = vmatprep.subr.mxu0 0.0
  %351 = vmatpush1.msra.mxu0 0.0
  %352 = vmatprep.subr.mxu0 0.0
  %353 = vmatpush1.msra.mxu0 0.0
  %354 = vmatprep.subr.mxu0 0.0
  %355 = vmatpush1.msra.mxu0 0.0
  %356 = vmatprep.subr.mxu0 0.0
  %357 = vmatpush1.msra.mxu0 0.0
  %358 = vmatprep.subr.mxu0 0.0
  %359 = vmatpush1.msra.mxu0 0.0
  %360 = vmatprep.subr.mxu0 0.0
  %361 = vmatpush1.msra.mxu0 0.0
  %362 = vmatprep.subr.mxu0 0.0
  %363 = vmatpush1.msra.mxu0 0.0
  %364 = vmatprep.subr.mxu0 0.0
  %365 = vmatpush1.msra.mxu0 0.0
  %366 = vmatprep.subr.mxu0 0.0
  %367 = vmatpush1.msra.mxu0 0.0
  %368 = vmatprep.mubr.f32.mxu0 0.0
  %369 = vmatmul.mubr.f32.gmra.mrb[0].mxu0 %v302
  %v370 = vpop.f32.mrb[0].mxu0
  %v371 = vadd.f32 %v298, %v370
  %v372 = vpop.f32.mrb[0].mxu0
  %373 = vdwg.mxu0
  %v374 = vmax.f32 %v371, 0.0
  %v375 = vld [vmem:[%s2 + $0x20] sm:$0xff]
  %v376 = vld [vmem:[%s2 + $0x50] sm:$0xff]
  %v377 = vld [vmem:[%s2 + $0x80] sm:$0xff]
  %v378 = vld [vmem:[%s2 + $0xb0] sm:$0xff]
  %v379 = vld [vmem:[%s3 + $0x4] sm:$0x1]
  %v381 = vlaneseq
  %v382 = vshrl.u32 %v381, 7
  %v383 = vsub.s32 0, %v382
  %v384 = vrot.slane %v379, %v383
  %v387 = vsel %vm207, %v374, 0
  %389 = vmatprep.subr.mxu0 0.0
  %390 = vmatpush1.msra.mxu0 %v375
  %391 = vmatprep.subr.mxu0 0.0
  %392 = vmatpush1.msra.mxu0 %v376
  %393 = vmatprep.subr.mxu0 0.0
  %394 = vmatpush1.msra.mxu0 %v377
  %395 = vmatprep.subr.mxu0 0.0
  %396 = vmatpush1.msra.mxu0 %v378
  %397 = vmatprep.subr.mxu0 0.0
  %398 = vmatpush1.msra.mxu0 0.0
  %399 = vmatprep.subr.mxu0 0.0
  %400 = vmatpush1.msra.mxu0 0.0
  %401 = vmatprep.subr.mxu0 0.0
  %402 = vmatpush1.msra.mxu0 0.0
  %403 = vmatprep.subr.mxu0 0.0
  %404 = vmatpush1.msra.mxu0 0.0
  %405 = vmatprep.subr.mxu0 0.0
  %406 = vmatpush1.msra.mxu0 0.0
  %407 = vmatprep.subr.mxu0 0.0
  %408 = vmatpush1.msra.mxu0 0.0
  %409 = vmatprep.subr.mxu0 0.0
  %410 = vmatpush1.msra.mxu0 0.0
  %411 = vmatprep.subr.mxu0 0.0
  %412 = vmatpush1.msra.mxu0 0.0
  %413 = vmatprep.subr.mxu0 0.0
  %414 = vmatpush1.msra.mxu0 0.0
  %415 = vmatprep.subr.mxu0 0.0
  %416 = vmatpush1.msra.mxu0 0.0
  %417 = vmatprep.subr.mxu0 0.0
  %418 = vmatpush1.msra.mxu0 0.0
  %419 = vmatprep.subr.mxu0 0.0
  %420 = vmatpush1.msra.mxu0 0.0
  %421 = vmatprep.subr.mxu0 0.0
  %422 = vmatpush1.msra.mxu0 0.0
  %423 = vmatprep.subr.mxu0 0.0
  %424 = vmatpush1.msra.mxu0 0.0
  %425 = vmatprep.subr.mxu0 0.0
  %426 = vmatpush1.msra.mxu0 0.0
  %427 = vmatprep.subr.mxu0 0.0
  %428 = vmatpush1.msra.mxu0 0.0
  %429 = vmatprep.subr.mxu0 0.0
  %430 = vmatpush1.msra.mxu0 0.0
  %431 = vmatprep.subr.mxu0 0.0
  %432 = vmatpush1.msra.mxu0 0.0
  %433 = vmatprep.subr.mxu0 0.0
  %434 = vmatpush1.msra.mxu0 0.0
  %435 = vmatprep.subr.mxu0 0.0
  %436 = vmatpush1.msra.mxu0 0.0
  %437 = vmatprep.subr.mxu0 0.0
  %438 = vmatpush1.msra.mxu0 0.0
  %439 = vmatprep.subr.mxu0 0.0
  %440 = vmatpush1.msra.mxu0 0.0
  %441 = vmatprep.subr.mxu0 0.0
  %442 = vmatpush1.msra.mxu0 0.0
  %443 = vmatprep.subr.mxu0 0.0
  %444 = vmatpush1.msra.mxu0 0.0
  %445 = vmatprep.subr.mxu0 0.0
  %446 = vmatpush1.msra.mxu0 0.0
  %447 = vmatprep.subr.mxu0 0.0
  %448 = vmatpush1.msra.mxu0 0.0
  %449 = vmatprep.subr.mxu0 0.0
  %450 = vmatpush1.msra.mxu0 0.0
  %451 = vmatprep.subr.mxu0 0.0
  %452 = vmatpush1.msra.mxu0 0.0
  %453 = vmatprep.mubr.f32.mxu0 0.0
  %454 = vmatmul.mubr.f32.gmra.mrb[0].mxu0 %v387
  %v455 = vpop.f32.mrb[0].mxu0
  %v456 = vadd.f32 %v384, %v455
  %v457 = vpop.f32.mrb[0].mxu0
  %458 = vdwg.mxu0
  %v459 = vmax.f32 %v456, 0.0
  %v460 = vld [vmem:[%s2 + $0x28] sm:$0xff]
  %v461 = vld [vmem:[%s2 + $0x58] sm:$0xff]
  %v462 = vld [vmem:[%s2 + $0x88] sm:$0xff]
  %v463 = vld [vmem:[%s2 + $0xb8] sm:$0xff]
  %v464 = vld [vmem:[%s2 + $0xe8] sm:$0xff]
  %v465 = vld [vmem:[%s2 + $0x118] sm:$0xff]
  %v466 = vld [vmem:[%s3 + $0x5] sm:$0x1]
  %v468 = vlaneseq
  %v469 = vshrl.u32 %v468, 7
  %v470 = vsub.s32 0, %v469
  %v471 = vrot.slane %v466, %v470
  %v474 = vsel %vm121, %v459, 0
  %476 = vmatprep.subr.mxu0 0.0
  %477 = vmatpush1.msra.mxu0 %v460
  %478 = vmatprep.subr.mxu0 0.0
  %479 = vmatpush1.msra.mxu0 %v461
  %480 = vmatprep.subr.mxu0 0.0
  %481 = vmatpush1.msra.mxu0 %v462
  %482 = vmatprep.subr.mxu0 0.0
  %483 = vmatpush1.msra.mxu0 %v463
  %484 = vmatprep.subr.mxu0 0.0
  %485 = vmatpush1.msra.mxu0 %v464
  %486 = vmatprep.subr.mxu0 0.0
  %487 = vmatpush1.msra.mxu0 %v465
  %488 = vmatprep.subr.mxu0 0.0
  %489 = vmatpush1.msra.mxu0 0.0
  %490 = vmatprep.subr.mxu0 0.0
  %491 = vmatpush1.msra.mxu0 0.0
  %492 = vmatprep.subr.mxu0 0.0
  %493 = vmatpush1.msra.mxu0 0.0
  %494 = vmatprep.subr.mxu0 0.0
  %495 = vmatpush1.msra.mxu0 0.0
  %496 = vmatprep.subr.mxu0 0.0
  %497 = vmatpush1.msra.mxu0 0.0
  %498 = vmatprep.subr.mxu0 0.0
  %499 = vmatpush1.msra.mxu0 0.0
  %500 = vmatprep.subr.mxu0 0.0
  %501 = vmatpush1.msra.mxu0 0.0
  %502 = vmatprep.subr.mxu0 0.0
  %503 = vmatpush1.msra.mxu0 0.0
  %504 = vmatprep.subr.mxu0 0.0
  %505 = vmatpush1.msra.mxu0 0.0
  %506 = vmatprep.subr.mxu0 0.0
  %507 = vmatpush1.msra.mxu0 0.0
  %508 = vmatprep.subr.mxu0 0.0
  %509 = vmatpush1.msra.mxu0 0.0
  %510 = vmatprep.subr.mxu0 0.0
  %511 = vmatpush1.msra.mxu0 0.0
  %512 = vmatprep.subr.mxu0 0.0
  %513 = vmatpush1.msra.mxu0 0.0
  %514 = vmatprep.subr.mxu0 0.0
  %515 = vmatpush1.msra.mxu0 0.0
  %516 = vmatprep.subr.mxu0 0.0
  %517 = vmatpush1.msra.mxu0 0.0
  %518 = vmatprep.subr.mxu0 0.0
  %519 = vmatpush1.msra.mxu0 0.0
  %520 = vmatprep.subr.mxu0 0.0
  %521 = vmatpush1.msra.mxu0 0.0
  %522 = vmatprep.subr.mxu0 0.0
  %523 = vmatpush1.msra.mxu0 0.0
  %524 = vmatprep.subr.mxu0 0.0
  %525 = vmatpush1.msra.mxu0 0.0
  %526 = vmatprep.subr.mxu0 0.0
  %527 = vmatpush1.msra.mxu0 0.0
  %528 = vmatprep.subr.mxu0 0.0
  %529 = vmatpush1.msra.mxu0 0.0
  %530 = vmatprep.subr.mxu0 0.0
  %531 = vmatpush1.msra.mxu0 0.0
  %532 = vmatprep.subr.mxu0 0.0
  %533 = vmatpush1.msra.mxu0 0.0
  %534 = vmatprep.subr.mxu0 0.0
  %535 = vmatpush1.msra.mxu0 0.0
  %536 = vmatprep.subr.mxu0 0.0
  %537 = vmatpush1.msra.mxu0 0.0
  %538 = vmatprep.subr.mxu0 0.0
  %539 = vmatpush1.msra.mxu0 0.0
  %540 = vmatprep.mubr.f32.mxu0 0.0
  %541 = vmatmul.mubr.f32.gmra.mrb[0].mxu0 %v474
  %v542 = vpop.f32.mrb[0].mxu0
  %v543 = vadd.f32 %v471, %v542
  %v544 = vpop.f32.mrb[0].mxu0
  %545 = vdwg.mxu0
  %547 = vrot.lane.b32.xlu0 %v278, 64
  %v548 = vpop.permute.xlu0 %547
  %v550 = vsel %vm33, %v543, %v548
  %vm551 = vcmask 785408
  %552 = vst.msk [vmem:[%s4] sm:$0xff] %vm551, %v550
  // Predicated region
  $region18: #{vae_forward.1} parent=0 // pred_check
    _
  $region19: #{vae_forward.1} parent=0 // pred_check_branch
    %554 = sbr.rel (0) target = $region21
  $region20: #{vae_forward.1} parent=0 // pred_region
    _
  $region21: #{vae_forward.1} parent=0 // pred_fallthru
    _
  // Predicated region
  $region22: #{vae_forward.1} parent=0 // pred_check
    _
  $region23: #{vae_forward.1} parent=0 // pred_check_branch
    %556 = sbr.rel (0) target = $region25
  $region24: #{vae_forward.1} parent=0 // pred_region
    _
  $region25: #{vae_forward.1} parent=0 // pred_fallthru
    _

</llo_original>
